<compile_context>
chip_gen: v6e
topology: v6e:2x2x1
jax: 0.10.0
libtpu: 0.0.40
codegen_flags: <defaults>
</compile_context>

<pallas_src>
import functools

import jax
import jax.numpy as jnp
from jax.experimental import pallas as pl
from jax.experimental.pallas import tpu as pltpu


def _round_up(x, m):
    return ((x + m - 1) // m) * m


def _cdiv(a, b):
    return (a + b - 1) // b


def _rnn_kernel(x_ref, whx_ref, bh_ref, whhT_ref, wphT_ref, bp_ref,
                out_ref, h_ref, *, t_chunk, seq_len, t_exact):
    """One (batch-tile, time-chunk) grid step of the recurrence.

    x_ref    : (1, B_tile, T_chunk) f32  raw inputs for this time chunk
    whx_ref  : (1, H_pad)           f32  W_hx as a row (pad lanes zero)
    bh_ref   : (1, H_pad)           f32  bias_h as a row (pad lanes zero)
    whhT_ref : (H_pad, H_pad)            W_hh^T  (h @ W_hh^T), pad rows/cols zero
    wphT_ref : (H_pad, C_pad)            W_ph^T, pad rows/cols zero
    bp_ref   : (1, C_pad)           f32
    out_ref  : (B_tile, C_pad)      f32  written only on the last time chunk
    h_ref    : (B_tile, H_pad)      f32  VMEM scratch carrying h across chunks
    """
    t_id = pl.program_id(1)
    n_t = pl.num_programs(1)

    @pl.when(t_id == 0)
    def _init():
        h_ref[...] = jnp.zeros_like(h_ref)

    whhT = whhT_ref[...]
    whx = whx_ref[...]                    # (1, H_pad)
    bh = bh_ref[...]                      # (1, H_pad)
    x_blk = x_ref[0]                      # (B_tile, T_chunk)
    mxu_dtype = whhT.dtype

    b_tile = x_blk.shape[0]
    # Two interleaved batch sub-tiles: while one half runs tanh on the EUP, the
    # other half's recurrent matmul drains through the MXU (rows independent).
    if b_tile >= 16:
        half = 8 * (b_tile // 16)         # sublane-aligned split
        subs = [(0, half), (half, b_tile - half)]
    else:
        subs = [(0, b_tile)]

    hs = [h_ref[lo:lo + sz, :] for (lo, sz) in subs]

    base = t_id * t_chunk
    for t in range(t_chunk):              # fully unrolled (T_chunk <= 32)
        pres = []
        for (lo, sz), h in zip(subs, hs):
            x_col = x_blk[lo:lo + sz, t:t + 1]                  # (sz, 1)
            inj = x_col * whx + bh                              # VPU rank-1 op
            pres.append(inj + jnp.dot(h.astype(mxu_dtype), whhT,
                                      preferred_element_type=jnp.float32))
        new_hs = [jnp.tanh(p) for p in pres]                    # EUP
        if t_exact:
            hs = new_hs
        else:
            valid = (base + t) < seq_len                        # mask padded steps
            hs = [jnp.where(valid, nh, h) for nh, h in zip(new_hs, hs)]

    for (lo, sz), h in zip(subs, hs):
        h_ref[lo:lo + sz, :] = h

    @pl.when(t_id == n_t - 1)
    def _final():
        wphT = wphT_ref[...]
        bp = bp_ref[...]
        for (lo, sz), h in zip(subs, hs):
            out_ref[lo:lo + sz, :] = (
                jnp.dot(h.astype(mxu_dtype), wphT,
                        preferred_element_type=jnp.float32) + bp)


def vanilla_rnn_forward(x, W_hx, W_hh, W_ph, bias_h, bias_p,
                        weight_dtype=jnp.float32):
    """x: (batch, seq_length). Weights in PyTorch layout:
         W_hx (H, 1), W_hh (H, H), W_ph (C, H), bias_h (H, 1), bias_p (C, 1).
       Returns p of shape (batch, num_classes).

       weight_dtype=jnp.bfloat16 feeds the MXU bf16 weights (f32 accumulate);
       recommended on v6e/v7x for large H.  Default f32 matches the reference
       to 1e-5; with bf16, loosen the tolerance."""
    B, T = x.shape
    H = W_hh.shape[0]
    C = W_ph.shape[0]

    x = x.astype(jnp.float32)

    # --- Lane-dense padding: hidden / class dims to full 128-lane groups. ----
    H_pad = _round_up(max(H, 1), 128)
    C_pad = _round_up(max(C, 1), 128)

    whhT = jnp.zeros((H_pad, H_pad), weight_dtype).at[:H, :H].set(
        W_hh.T.astype(weight_dtype))
    wphT = jnp.zeros((H_pad, C_pad), weight_dtype).at[:H, :C].set(
        W_ph.T.astype(weight_dtype))
    whx_row = jnp.zeros((1, H_pad), jnp.float32).at[:, :H].set(
        W_hx.reshape(1, H).astype(jnp.float32))
    bh_row = jnp.zeros((1, H_pad), jnp.float32).at[:, :H].set(
        bias_h.reshape(1, H).astype(jnp.float32))
    bp_row = jnp.zeros((1, C_pad), jnp.float32).at[:, :C].set(
        bias_p.reshape(1, C).astype(jnp.float32))

    # --- Batch tiling: >= 2 tiles when possible (v7x has 2 TensorCores). -----
    B_pad8 = _round_up(B, 8)
    if B_pad8 <= 8:
        B_tile = 8
    elif B_pad8 < 256:
        B_tile = _round_up(_cdiv(B_pad8, 2), 8)
    else:
        B_tile = min(256, _round_up(_cdiv(B_pad8, 2), 128))
    B_pad = _round_up(B_pad8, B_tile)
    num_b = B_pad // B_tile

    # --- Time chunking: small streamed x chunks, h carried in VMEM scratch. --
    T_chunk = T if T <= 32 else 32
    num_t = _cdiv(T, T_chunk)
    T_pad = num_t * T_chunk
    t_exact = (T_pad == T)

    x_pad = jnp.zeros((B_pad, T_pad), jnp.float32).at[:B, :T].set(x)
    # (num_t, B_pad, T_chunk): chunk axis leading, so the x block's trailing
    # dims (B_tile, T_chunk) satisfy the (8, full-dim) layout constraint.
    x_chunks = x_pad.reshape(B_pad, num_t, T_chunk).transpose(1, 0, 2)

    # --- Exact VMEM accounting (double-buffered blocks + scratch). -----------
    itemsize_w = jnp.dtype(weight_dtype).itemsize
    vmem_need = (
        2 * 4 * B_tile * T_chunk            # x chunk (double-buffered)
        + 2 * 4 * 2 * H_pad                 # whx_row + bh_row
        + 2 * itemsize_w * H_pad * H_pad    # whhT
        + 2 * itemsize_w * H_pad * C_pad    # wphT
        + 2 * 4 * C_pad                     # bp_row
        + 2 * 4 * B_tile * C_pad            # output block
        + 4 * B_tile * H_pad                # h scratch
    )
    vmem_limit = int(min(48 << 20, max(4 << 20, (vmem_need * 5) // 4)))

    cost = pl.CostEstimate(
        flops=int(2 * T * B_pad * H_pad * H_pad      # recurrent matmuls
                  + 3 * T * B_pad * H_pad            # injection + add
                  + 2 * B_pad * H_pad * C_pad),      # output projection
        transcendentals=int(T * B_pad * H_pad),
        bytes_accessed=int(4 * B_pad * T_pad
                           + itemsize_w * (H_pad * H_pad + H_pad * C_pad)
                           + 4 * (2 * H_pad + 2 * C_pad)
                           + 4 * B_pad * C_pad),
    )

    kernel = functools.partial(_rnn_kernel, t_chunk=T_chunk, seq_len=T,
                               t_exact=t_exact)

    out_padded = pl.pallas_call(
        kernel,
        out_shape=jax.ShapeDtypeStruct((B_pad, C_pad), jnp.float32),
        grid=(num_b, num_t),
        in_specs=[
            pl.BlockSpec((1, B_tile, T_chunk), lambda b, t: (t, b, 0)),  # x chunk
            pl.BlockSpec((1, H_pad), lambda b, t: (0, 0)),               # W_hx row
            pl.BlockSpec((1, H_pad), lambda b, t: (0, 0)),               # bias_h row
            pl.BlockSpec((H_pad, H_pad), lambda b, t: (0, 0)),           # W_hh^T
            pl.BlockSpec((H_pad, C_pad), lambda b, t: (0, 0)),           # W_ph^T
            pl.BlockSpec((1, C_pad), lambda b, t: (0, 0)),               # bias_p row
        ],
        out_specs=pl.BlockSpec((B_tile, C_pad), lambda b, t: (b, 0)),
        scratch_shapes=[pltpu.VMEM((B_tile, H_pad), jnp.float32)],       # h carry
        compiler_params=pltpu.CompilerParams(
            dimension_semantics=("parallel", "arbitrary"),
            vmem_limit_bytes=vmem_limit,
        ),
        cost_estimate=cost,
    )(x_chunks, whx_row, bh_row, whhT, wphT, bp_row)

    return out_padded[:B, :C]


def reference_forward(x, W_hx, W_hh, W_ph, bias_h, bias_p):
    """Pure-JAX transcription of the PyTorch forward (column-major h)."""
    B, T = x.shape
    H = W_hh.shape[0]
    h = jnp.zeros((H, B), dtype=jnp.float32)
    for i in range(T):
        x_t = x[:, i].reshape(1, -1)  # (1, B)
        h = jnp.tanh(W_hx @ x_t + W_hh @ h + bias_h)
    p = W_ph @ h + bias_p
    return p.T


if __name__ == "__main__":
    # Small shapes consistent with the module: scalar input per timestep.
    batch_size = 2
    seq_length = 8
    input_dim = 1
    num_hidden = 32
    num_classes = 10

    key = jax.random.PRNGKey(0)
    k_x, k_hx, k_hh, k_ph = jax.random.split(key, 4)

    std_dev = 0.001
    W_hx = std_dev * jax.random.normal(k_hx, (num_hidden, input_dim), jnp.float32)
    W_hh = std_dev * jax.random.normal(k_hh, (num_hidden, num_hidden), jnp.float32)
    W_ph = std_dev * jax.random.normal(k_ph, (num_classes, num_hidden), jnp.float32)
    bias_h = jnp.zeros((num_hidden, 1), jnp.float32)
    bias_p = jnp.zeros((num_classes, 1), jnp.float32)

    x = jax.random.normal(k_x, (batch_size, seq_length), jnp.float32)

    out = vanilla_rnn_forward(x, W_hx, W_hh, W_ph, bias_h, bias_p)
    out = jax.block_until_ready(out)

    ref = reference_forward(x, W_hx, W_hh, W_ph, bias_h, bias_p)
    assert out.shape == (batch_size, num_classes)
    assert jnp.allclose(out, ref, atol=1e-5, rtol=1e-5), "mismatch vs reference"

    print("KERNEL_OK")
</pallas_src>

<mosaic_0001>
module attributes {stable_mosaic.version = 11 : i64} {
  func.func @_rnn_kernel(%arg0: i32, %arg1: i32, %arg2: memref<1x8x8xf32, #tpu.memory_space<vmem>>, %arg3: memref<1x128xf32, #tpu.memory_space<vmem>>, %arg4: memref<1x128xf32, #tpu.memory_space<vmem>>, %arg5: memref<128x128xf32, #tpu.memory_space<vmem>>, %arg6: memref<128x128xf32, #tpu.memory_space<vmem>>, %arg7: memref<1x128xf32, #tpu.memory_space<vmem>>, %arg8: memref<8x128xf32, #tpu.memory_space<vmem>>, %arg9: memref<8x128xf32, #tpu.memory_space<vmem>>) attributes {dimension_semantics = [#tpu.dimension_semantics<parallel>, #tpu.dimension_semantics<arbitrary>], iteration_bounds = array<i64: 1, 1>, scalar_prefetch = 0 : i64, scratch_operands = 1 : i64, tpu.core_type = #tpu.core_type<tc>, window_params = [{transform_indices = @transform_0, window_bounds = array<i64: 1, 8, 8>}, {pipeline_mode = #tpu.pipeline_mode<synchronous>, transform_indices = @transform_1, window_bounds = array<i64: 1, 128>}, {pipeline_mode = #tpu.pipeline_mode<synchronous>, transform_indices = @transform_2, window_bounds = array<i64: 1, 128>}, {pipeline_mode = #tpu.pipeline_mode<synchronous>, transform_indices = @transform_3, window_bounds = array<i64: 128, 128>}, {pipeline_mode = #tpu.pipeline_mode<synchronous>, transform_indices = @transform_4, window_bounds = array<i64: 128, 128>}, {pipeline_mode = #tpu.pipeline_mode<synchronous>, transform_indices = @transform_5, window_bounds = array<i64: 1, 128>}, {transform_indices = @transform_6, window_bounds = array<i64: 8, 128>}]} {
    %c0_i32 = arith.constant 0 : i32
    %0 = arith.cmpi eq, %arg1, %c0_i32 : i32
    %1 = arith.extui %0 : i1 to i32
    %c0_i32_0 = arith.constant 0 : i32
    %2 = arith.cmpi ne, %1, %c0_i32_0 : i32
    scf.if %2 {
      %cst_22 = arith.constant 0.000000e+00 : f32
      %85 = vector.broadcast %cst_22 : f32 to vector<8x128xf32>
      %c0_23 = arith.constant 0 : index
      %c0_24 = arith.constant 0 : index
      %86 = vector.load %arg9[%c0_23, %c0_24] : memref<8x128xf32, #tpu.memory_space<vmem>>, vector<8x128xf32>
      tpu.vector_store %arg9[%c0_23, %c0_24], %85 {strides = array<i32>} : memref<8x128xf32, #tpu.memory_space<vmem>>, vector<8x128xf32>,
    } else {
    }
    %c0 = arith.constant 0 : index
    %c0_1 = arith.constant 0 : index
    %3 = vector.load %arg5[%c0, %c0_1] : memref<128x128xf32, #tpu.memory_space<vmem>>, vector<128x128xf32>
    %c0_2 = arith.constant 0 : index
    %c0_3 = arith.constant 0 : index
    %4 = vector.load %arg3[%c0_2, %c0_3] : memref<1x128xf32, #tpu.memory_space<vmem>>, vector<1x128xf32>
    %c0_4 = arith.constant 0 : index
    %c0_5 = arith.constant 0 : index
    %5 = vector.load %arg4[%c0_4, %c0_5] : memref<1x128xf32, #tpu.memory_space<vmem>>, vector<1x128xf32>
    %c0_6 = arith.constant 0 : index
    %c0_7 = arith.constant 0 : index
    %c0_8 = arith.constant 0 : index
    %6 = vector.load %arg2[%c0_6, %c0_7, %c0_8] : memref<1x8x8xf32, #tpu.memory_space<vmem>>, vector<1x8x8xf32>
    %7 = vector.shape_cast %6 : vector<1x8x8xf32> to vector<8x8xf32>
    %c0_9 = arith.constant 0 : index
    %c0_10 = arith.constant 0 : index
    %8 = vector.load %arg9[%c0_9, %c0_10] : memref<8x128xf32, #tpu.memory_space<vmem>>, vector<8x128xf32>
    %9 = vector.extract_strided_slice %7 {offsets = [0, 0], sizes = [8, 1], strides = [1, 1]} : vector<8x8xf32> to vector<8x1xf32>
    %10 = vector.broadcast %9 : vector<8x1xf32> to vector<8x128xf32>
    %11 = vector.broadcast %4 : vector<1x128xf32> to vector<8x128xf32>
    %12 = arith.mulf %10, %11 : vector<8x128xf32>
    %13 = vector.broadcast %5 : vector<1x128xf32> to vector<8x128xf32>
    %14 = arith.addf %12, %13 : vector<8x128xf32>
    %cst = arith.constant dense<0.000000e+00> : vector<8x128xf32>
    %15 = tpu.matmul %8, %3, %cst {dimension_numbers = #tpu.dot_dimension_numbers<[1], [0], [0], [1], [0, 0, 1, 1], [], []>} : vector<8x128xf32>, vector<128x128xf32>, vector<8x128xf32> -> vector<8x128xf32>
    %16 = arith.addf %14, %15 : vector<8x128xf32>
    %17 = math.tanh %16 : vector<8x128xf32>
    %18 = vector.extract_strided_slice %7 {offsets = [0, 1], sizes = [8, 1], strides = [1, 1]} : vector<8x8xf32> to vector<8x1xf32>
    %19 = vector.broadcast %18 : vector<8x1xf32> to vector<8x128xf32>
    %20 = vector.broadcast %4 : vector<1x128xf32> to vector<8x128xf32>
    %21 = arith.mulf %19, %20 : vector<8x128xf32>
    %22 = vector.broadcast %5 : vector<1x128xf32> to vector<8x128xf32>
    %23 = arith.addf %21, %22 : vector<8x128xf32>
    %cst_11 = arith.constant dense<0.000000e+00> : vector<8x128xf32>
    %24 = tpu.matmul %17, %3, %cst_11 {dimension_numbers = #tpu.dot_dimension_numbers<[1], [0], [0], [1], [0, 0, 1, 1], [], []>} : vector<8x128xf32>, vector<128x128xf32>, vector<8x128xf32> -> vector<8x128xf32>
    %25 = arith.addf %23, %24 : vector<8x128xf32>
    %26 = math.tanh %25 : vector<8x128xf32>
    %27 = vector.extract_strided_slice %7 {offsets = [0, 2], sizes = [8, 1], strides = [1, 1]} : vector<8x8xf32> to vector<8x1xf32>
    %28 = vector.broadcast %27 : vector<8x1xf32> to vector<8x128xf32>
    %29 = vector.broadcast %4 : vector<1x128xf32> to vector<8x128xf32>
    %30 = arith.mulf %28, %29 : vector<8x128xf32>
    %31 = vector.broadcast %5 : vector<1x128xf32> to vector<8x128xf32>
    %32 = arith.addf %30, %31 : vector<8x128xf32>
    %cst_12 = arith.constant dense<0.000000e+00> : vector<8x128xf32>
    %33 = tpu.matmul %26, %3, %cst_12 {dimension_numbers = #tpu.dot_dimension_numbers<[1], [0], [0], [1], [0, 0, 1, 1], [], []>} : vector<8x128xf32>, vector<128x128xf32>, vector<8x128xf32> -> vector<8x128xf32>
    %34 = arith.addf %32, %33 : vector<8x128xf32>
    %35 = math.tanh %34 : vector<8x128xf32>
    %36 = vector.extract_strided_slice %7 {offsets = [0, 3], sizes = [8, 1], strides = [1, 1]} : vector<8x8xf32> to vector<8x1xf32>
    %37 = vector.broadcast %36 : vector<8x1xf32> to vector<8x128xf32>
    %38 = vector.broadcast %4 : vector<1x128xf32> to vector<8x128xf32>
    %39 = arith.mulf %37, %38 : vector<8x128xf32>
    %40 = vector.broadcast %5 : vector<1x128xf32> to vector<8x128xf32>
    %41 = arith.addf %39, %40 : vector<8x128xf32>
    %cst_13 = arith.constant dense<0.000000e+00> : vector<8x128xf32>
    %42 = tpu.matmul %35, %3, %cst_13 {dimension_numbers = #tpu.dot_dimension_numbers<[1], [0], [0], [1], [0, 0, 1, 1], [], []>} : vector<8x128xf32>, vector<128x128xf32>, vector<8x128xf32> -> vector<8x128xf32>
    %43 = arith.addf %41, %42 : vector<8x128xf32>
    %44 = math.tanh %43 : vector<8x128xf32>
    %45 = vector.extract_strided_slice %7 {offsets = [0, 4], sizes = [8, 1], strides = [1, 1]} : vector<8x8xf32> to vector<8x1xf32>
    %46 = vector.broadcast %45 : vector<8x1xf32> to vector<8x128xf32>
    %47 = vector.broadcast %4 : vector<1x128xf32> to vector<8x128xf32>
    %48 = arith.mulf %46, %47 : vector<8x128xf32>
    %49 = vector.broadcast %5 : vector<1x128xf32> to vector<8x128xf32>
    %50 = arith.addf %48, %49 : vector<8x128xf32>
    %cst_14 = arith.constant dense<0.000000e+00> : vector<8x128xf32>
    %51 = tpu.matmul %44, %3, %cst_14 {dimension_numbers = #tpu.dot_dimension_numbers<[1], [0], [0], [1], [0, 0, 1, 1], [], []>} : vector<8x128xf32>, vector<128x128xf32>, vector<8x128xf32> -> vector<8x128xf32>
    %52 = arith.addf %50, %51 : vector<8x128xf32>
    %53 = math.tanh %52 : vector<8x128xf32>
    %54 = vector.extract_strided_slice %7 {offsets = [0, 5], sizes = [8, 1], strides = [1, 1]} : vector<8x8xf32> to vector<8x1xf32>
    %55 = vector.broadcast %54 : vector<8x1xf32> to vector<8x128xf32>
    %56 = vector.broadcast %4 : vector<1x128xf32> to vector<8x128xf32>
    %57 = arith.mulf %55, %56 : vector<8x128xf32>
    %58 = vector.broadcast %5 : vector<1x128xf32> to vector<8x128xf32>
    %59 = arith.addf %57, %58 : vector<8x128xf32>
    %cst_15 = arith.constant dense<0.000000e+00> : vector<8x128xf32>
    %60 = tpu.matmul %53, %3, %cst_15 {dimension_numbers = #tpu.dot_dimension_numbers<[1], [0], [0], [1], [0, 0, 1, 1], [], []>} : vector<8x128xf32>, vector<128x128xf32>, vector<8x128xf32> -> vector<8x128xf32>
    %61 = arith.addf %59, %60 : vector<8x128xf32>
    %62 = math.tanh %61 : vector<8x128xf32>
    %63 = vector.extract_strided_slice %7 {offsets = [0, 6], sizes = [8, 1], strides = [1, 1]} : vector<8x8xf32> to vector<8x1xf32>
    %64 = vector.broadcast %63 : vector<8x1xf32> to vector<8x128xf32>
    %65 = vector.broadcast %4 : vector<1x128xf32> to vector<8x128xf32>
    %66 = arith.mulf %64, %65 : vector<8x128xf32>
    %67 = vector.broadcast %5 : vector<1x128xf32> to vector<8x128xf32>
    %68 = arith.addf %66, %67 : vector<8x128xf32>
    %cst_16 = arith.constant dense<0.000000e+00> : vector<8x128xf32>
    %69 = tpu.matmul %62, %3, %cst_16 {dimension_numbers = #tpu.dot_dimension_numbers<[1], [0], [0], [1], [0, 0, 1, 1], [], []>} : vector<8x128xf32>, vector<128x128xf32>, vector<8x128xf32> -> vector<8x128xf32>
    %70 = arith.addf %68, %69 : vector<8x128xf32>
    %71 = math.tanh %70 : vector<8x128xf32>
    %72 = vector.extract_strided_slice %7 {offsets = [0, 7], sizes = [8, 1], strides = [1, 1]} : vector<8x8xf32> to vector<8x1xf32>
    %73 = vector.broadcast %72 : vector<8x1xf32> to vector<8x128xf32>
    %74 = vector.broadcast %4 : vector<1x128xf32> to vector<8x128xf32>
    %75 = arith.mulf %73, %74 : vector<8x128xf32>
    %76 = vector.broadcast %5 : vector<1x128xf32> to vector<8x128xf32>
    %77 = arith.addf %75, %76 : vector<8x128xf32>
    %cst_17 = arith.constant dense<0.000000e+00> : vector<8x128xf32>
    %78 = tpu.matmul %71, %3, %cst_17 {dimension_numbers = #tpu.dot_dimension_numbers<[1], [0], [0], [1], [0, 0, 1, 1], [], []>} : vector<8x128xf32>, vector<128x128xf32>, vector<8x128xf32> -> vector<8x128xf32>
    %79 = arith.addf %77, %78 : vector<8x128xf32>
    %80 = math.tanh %79 : vector<8x128xf32>
    %c0_18 = arith.constant 0 : index
    %c0_19 = arith.constant 0 : index
    %81 = vector.load %arg9[%c0_18, %c0_19] : memref<8x128xf32, #tpu.memory_space<vmem>>, vector<8x128xf32>
    tpu.vector_store %arg9[%c0_18, %c0_19], %80 {strides = array<i32>} : memref<8x128xf32, #tpu.memory_space<vmem>>, vector<8x128xf32>,
    %c0_i32_20 = arith.constant 0 : i32
    %82 = arith.cmpi eq, %arg1, %c0_i32_20 : i32
    %83 = arith.extui %82 : i1 to i32
    %c0_i32_21 = arith.constant 0 : i32
    %84 = arith.cmpi ne, %83, %c0_i32_21 : i32
    scf.if %84 {
      %c0_22 = arith.constant 0 : index
      %c0_23 = arith.constant 0 : index
      %85 = vector.load %arg6[%c0_22, %c0_23] : memref<128x128xf32, #tpu.memory_space<vmem>>, vector<128x128xf32>
      %c0_24 = arith.constant 0 : index
      %c0_25 = arith.constant 0 : index
      %86 = vector.load %arg7[%c0_24, %c0_25] : memref<1x128xf32, #tpu.memory_space<vmem>>, vector<1x128xf32>
      %cst_26 = arith.constant dense<0.000000e+00> : vector<8x128xf32>
      %87 = tpu.matmul %80, %85, %cst_26 {dimension_numbers = #tpu.dot_dimension_numbers<[1], [0], [0], [1], [0, 0, 1, 1], [], []>} : vector<8x128xf32>, vector<128x128xf32>, vector<8x128xf32> -> vector<8x128xf32>
      %88 = vector.broadcast %86 : vector<1x128xf32> to vector<8x128xf32>
      %89 = arith.addf %87, %88 : vector<8x128xf32>
      %c0_27 = arith.constant 0 : index
      %c0_28 = arith.constant 0 : index
      %90 = vector.load %arg8[%c0_27, %c0_28] : memref<8x128xf32, #tpu.memory_space<vmem>>, vector<8x128xf32>
      tpu.vector_store %arg8[%c0_27, %c0_28], %89 {strides = array<i32>} : memref<8x128xf32, #tpu.memory_space<vmem>>, vector<8x128xf32>,
    } else {
    }
    return
  }
  func.func @transform_0(%arg0: i32, %arg1: i32) -> (i32, i32, i32) {
    %c0_i32 = arith.constant 0 : i32
    %c0_i32_0 = arith.constant 0 : i32
    return %arg1, %arg0, %c0_i32 : i32, i32, i32
  }
  func.func @transform_1(%arg0: i32, %arg1: i32) -> (i32, i32) {
    %c0_i32 = arith.constant 0 : i32
    %c0_i32_0 = arith.constant 0 : i32
    %c0_i32_1 = arith.constant 0 : i32
    return %c0_i32, %c0_i32_0 : i32, i32
  }
  func.func @transform_2(%arg0: i32, %arg1: i32) -> (i32, i32) {
    %c0_i32 = arith.constant 0 : i32
    %c0_i32_0 = arith.constant 0 : i32
    %c0_i32_1 = arith.constant 0 : i32
    return %c0_i32, %c0_i32_0 : i32, i32
  }
  func.func @transform_3(%arg0: i32, %arg1: i32) -> (i32, i32) {
    %c0_i32 = arith.constant 0 : i32
    %c0_i32_0 = arith.constant 0 : i32
    %c0_i32_1 = arith.constant 0 : i32
    return %c0_i32, %c0_i32_0 : i32, i32
  }
  func.func @transform_4(%arg0: i32, %arg1: i32) -> (i32, i32) {
    %c0_i32 = arith.constant 0 : i32
    %c0_i32_0 = arith.constant 0 : i32
    %c0_i32_1 = arith.constant 0 : i32
    return %c0_i32, %c0_i32_0 : i32, i32
  }
  func.func @transform_5(%arg0: i32, %arg1: i32) -> (i32, i32) {
    %c0_i32 = arith.constant 0 : i32
    %c0_i32_0 = arith.constant 0 : i32
    %c0_i32_1 = arith.constant 0 : i32
    return %c0_i32, %c0_i32_0 : i32, i32
  }
  func.func @transform_6(%arg0: i32, %arg1: i32) -> (i32, i32) {
    %c0_i32 = arith.constant 0 : i32
    %c0_i32_0 = arith.constant 0 : i32
    return %arg0, %c0_i32 : i32, i32
  }
}

</mosaic_0001>

<llo_original>
// kernel: tpu_custom_call.1
$region0: #{tpu_custom_call.1}
  #allocation0 [shape = 'u32[]', space=smem, size = 0x4, offset = 0x4, fixed_abs, tag = 'smem constant byte address 0x4 - core index']
  #allocation1 [shape = 'u32[144,128]{1,0:T(1,128)}', space=vmem, size = 0x12000, scoped, tag = 'internal scratch']
  #allocation2 [shape = 'f32[8,128]{1,0:T(8,128)}', space=vmem, size = 0x1000, scoped, tag = 'scratch operand']
  %s0 = inlined_call_operand.hbm [shape: f32[1,8,8], index: 0, kind: input, shape index: {}]
  %s1 = inlined_call_operand.vmem [shape: f32[1,128], index: 1, kind: input, shape index: {}]
  %s2 = inlined_call_operand.vmem [shape: f32[1,128], index: 2, kind: input, shape index: {}]
  %s3 = inlined_call_operand.hbm [shape: f32[128,128], index: 3, kind: input, shape index: {}]
  %s4 = inlined_call_operand.hbm [shape: f32[128,128], index: 4, kind: input, shape index: {}]
  %s5 = inlined_call_operand.vmem [shape: f32[1,128], index: 5, kind: input, shape index: {}]
  %s6 = inlined_call_operand.hbm [shape: f32[8,128], index: 6, kind: output, shape index: {}]
  %s7 = sld [smem:[#allocation0]]
  $region54: #{tpu_custom_call.1} parent=0
    _
  %s9 = ssub.s32 1, %s7
  %s10 = scalar_select 0, %s9, %s7
  $region1: #{tpu_custom_call.1} parent=0
    #allocation3 [shape = 'u8[4096]{0}', space=vmem, size = 0x1000, scoped, tag = 'input window, operand 0, single buffered']
    #allocation4 [shape = 's32[1]{0}', space=sflag, size = 0x4, scoped, tag = 'scoped memory for tpu_custom_call.1']
    #allocation5 [shape = 's32[1]{0}', space=sflag, size = 0x4, scoped, tag = 'scoped memory for tpu_custom_call.1']
    #allocation6 [shape = 'u8[65536]{0}', space=vmem, size = 0x10000, scoped, tag = 'input window, operand 3, single buffered']
    #allocation7 [shape = 's32[1]{0}', space=sflag, size = 0x4, scoped, tag = 'scoped memory for tpu_custom_call.1']
    #allocation8 [shape = 'u8[65536]{0}', space=vmem, size = 0x10000, scoped, tag = 'input window, operand 4, single buffered']
    #allocation9 [shape = 'u8[4096]{0}', space=vmem, size = 0x1000, scoped, tag = 'output window, operand 0, single buffered']
    %11 = vsyncpa [#allocation4], 0
    %12 = vsyncpa [#allocation7], 0
    %13 = vsyncpa [#allocation5], 0
    // Predicated region
    $region2: #{tpu_custom_call.1} parent=1 // pred_check
      _
    $region3: #{tpu_custom_call.1} parent=1 // pred_check_branch
      %15 = sbr.rel (0) target = $region5
    $region4: #{tpu_custom_call.1} parent=1 // pred_region
      %s17 = ssub.s32 128, 128
      %18 = vsyncadd [#allocation4], %s17
      %s20 = sshll.u32 [#allocation3], 4
      %s21 = int_to_ptr.vmem [resolvable:$true] %s20
      %23 = dma.hbm_to_vmem [thread:$0]  %s0, 128, %s21, [#allocation4]
    $region5: #{tpu_custom_call.1} parent=1 // pred_fallthru
      _
    // Predicated region
    $region6: #{tpu_custom_call.1} parent=1 // pred_check
      _
    $region7: #{tpu_custom_call.1} parent=1 // pred_check_branch
      %25 = sbr.rel (0) target = $region9
    $region8: #{tpu_custom_call.1} parent=1 // pred_region
      _
    $region9: #{tpu_custom_call.1} parent=1 // pred_fallthru
      _
    // Predicated region
    $region10: #{tpu_custom_call.1} parent=1 // pred_check
      _
    $region11: #{tpu_custom_call.1} parent=1 // pred_check_branch
      %27 = sbr.rel (0) target = $region13
    $region12: #{tpu_custom_call.1} parent=1 // pred_region
      _
    $region13: #{tpu_custom_call.1} parent=1 // pred_fallthru
      _
    // Predicated region
    $region14: #{tpu_custom_call.1} parent=1 // pred_check
      _
    $region15: #{tpu_custom_call.1} parent=1 // pred_check_branch
      %29 = sbr.rel (0) target = $region17
    $region16: #{tpu_custom_call.1} parent=1 // pred_region
      %s31 = ssub.s32 2048, 2048
      %32 = vsyncadd [#allocation7], %s31
      %s33 = sshll.u32 [#allocation6], 4
      %s34 = int_to_ptr.vmem [resolvable:$true] %s33
      %39 = dma.hbm_to_vmem [thread:$0]  %s3, 2048, %s34, [#allocation7], 128, 128, 8
    $region17: #{tpu_custom_call.1} parent=1 // pred_fallthru
      _
    // Predicated region
    $region18: #{tpu_custom_call.1} parent=1 // pred_check
      _
    $region19: #{tpu_custom_call.1} parent=1 // pred_check_branch
      %41 = sbr.rel (0) target = $region21
    $region20: #{tpu_custom_call.1} parent=1 // pred_region
      %s43 = ssub.s32 2048, 2048
      %44 = vsyncadd [#allocation7], %s43
      %s45 = sshll.u32 [#allocation8], 4
      %s46 = int_to_ptr.vmem [resolvable:$true] %s45
      %51 = dma.hbm_to_vmem [thread:$0]  %s4, 2048, %s46, [#allocation7], 128, 128, 8
    $region21: #{tpu_custom_call.1} parent=1 // pred_fallthru
      _
    // Predicated region
    $region22: #{tpu_custom_call.1} parent=1 // pred_check
      _
    $region23: #{tpu_custom_call.1} parent=1 // pred_check_branch
      %53 = sbr.rel (0) target = $region25
    $region24: #{tpu_custom_call.1} parent=1 // pred_region
      _
    $region25: #{tpu_custom_call.1} parent=1 // pred_fallthru
      _
    // Predicated region
    $region26: #{tpu_custom_call.1} parent=1 // pred_check
      _
    $region27: #{tpu_custom_call.1} parent=1 // pred_check_branch
      %55 = sbr.rel (0) target = $region29
    $region28: #{tpu_custom_call.1} parent=1 // pred_region
      %56 = dma.done [#allocation4], 128
    $region29: #{tpu_custom_call.1} parent=1 // pred_fallthru
      _
    // Predicated region
    $region30: #{tpu_custom_call.1} parent=1 // pred_check
      _
    $region31: #{tpu_custom_call.1} parent=1 // pred_check_branch
      %58 = sbr.rel (0) target = $region33
    $region32: #{tpu_custom_call.1} parent=1 // pred_region
      %59 = dma.done [#allocation7], 2048
    $region33: #{tpu_custom_call.1} parent=1 // pred_fallthru
      _
    // Predicated region
    $region34: #{tpu_custom_call.1} parent=1 // pred_check
      _
    $region35: #{tpu_custom_call.1} parent=1 // pred_check_branch
      %61 = sbr.rel (0) target = $region37
    $region36: #{tpu_custom_call.1} parent=1 // pred_region
      %62 = dma.done [#allocation7], 2048
    $region37: #{tpu_custom_call.1} parent=1 // pred_fallthru
      _
    %p63 = scmp.eq.s32.totalorder 0, 0
    // Predicated region
    $region38: #{tpu_custom_call.1} parent=1 // pred_check
      %p64 = pneg %p63
    $region39: #{tpu_custom_call.1} parent=1 // pred_check_branch
      %66 = sbr.rel (%p64) target = $region41
    $region40: #{tpu_custom_call.1} parent=1 // pred_region
      %67 = vst [vmem:[#allocation2] sm:$0xff] 0.0
    $region41: #{tpu_custom_call.1} parent=1 // pred_fallthru
      _
    %v68 = vld [vmem:[#allocation6] sm:$0xff]
    %v69 = vld [vmem:[#allocation6 + $0x8] sm:$0xff]
    %v70 = vld [vmem:[#allocation6 + $0x10] sm:$0xff]
    %v71 = vld [vmem:[#allocation6 + $0x18] sm:$0xff]
    %v72 = vld [vmem:[#allocation6 + $0x20] sm:$0xff]
    %v73 = vld [vmem:[#allocation6 + $0x28] sm:$0xff]
    %v74 = vld [vmem:[#allocation6 + $0x30] sm:$0xff]
    %v75 = vld [vmem:[#allocation6 + $0x38] sm:$0xff]
    %v76 = vld [vmem:[#allocation6 + $0x40] sm:$0xff]
    %v77 = vld [vmem:[#allocation6 + $0x48] sm:$0xff]
    %v78 = vld [vmem:[#allocation6 + $0x50] sm:$0xff]
    %v79 = vld [vmem:[#allocation6 + $0x58] sm:$0xff]
    %v80 = vld [vmem:[#allocation6 + $0x60] sm:$0xff]
    %v81 = vld [vmem:[#allocation6 + $0x68] sm:$0xff]
    %v82 = vld [vmem:[#allocation6 + $0x70] sm:$0xff]
    %v83 = vld [vmem:[#allocation6 + $0x78] sm:$0xff]
    %v84 = vld [vmem:[%s1] sm:$0x1]
    %v85 = vld [vmem:[%s2] sm:$0x1]
    %v86 = vld [vmem:[#allocation3] sm:$0xff]
    %v87 = vld [vmem:[#allocation2] sm:$0xff]
    %89 = vset.pattern.permute.xlu0 0
    %90 = vperm.xlu0 %89, %v86
    %v91 = vpop.permute.xlu0 %90
    %v94 = vlaneseq
    %v95 = vshrl.u32 %v94, 7
    %v96 = vsub.s32 0, %v95
    %v97 = vrot.slane %v84, %v96
    %v99 = vmul.f32 %v91, %v97
    %v101 = vlaneseq
    %v102 = vshrl.u32 %v101, 7
    %v103 = vsub.s32 0, %v102
    %v104 = vrot.slane %v85, %v103
    %v106 = vadd.f32 %v99, %v104
    %107 = vmatprep.subr.mxu0 0.0
    %108 = vmatpush1.msra.mxu0 %v83
    %109 = vmatprep.subr.mxu0 0.0
    %110 = vmatpush1.msra.mxu0 %v82
    %111 = vmatprep.subr.mxu0 0.0
    %112 = vmatpush1.msra.mxu0 %v81
    %113 = vmatprep.subr.mxu0 0.0
    %114 = vmatpush1.msra.mxu0 %v80
    %115 = vmatprep.subr.mxu0 0.0
    %116 = vmatpush1.msra.mxu0 %v79
    %117 = vmatprep.subr.mxu0 0.0
    %118 = vmatpush1.msra.mxu0 %v78
    %119 = vmatprep.subr.mxu0 0.0
    %120 = vmatpush1.msra.mxu0 %v77
    %121 = vmatprep.subr.mxu0 0.0
    %122 = vmatpush1.msra.mxu0 %v76
    %123 = vmatprep.subr.mxu0 0.0
    %124 = vmatpush1.msra.mxu0 %v75
    %125 = vmatprep.subr.mxu0 0.0
    %126 = vmatpush1.msra.mxu0 %v74
    %127 = vmatprep.subr.mxu0 0.0
    %128 = vmatpush1.msra.mxu0 %v73
    %129 = vmatprep.subr.mxu0 0.0
    %130 = vmatpush1.msra.mxu0 %v72
    %131 = vmatprep.subr.mxu0 0.0
    %132 = vmatpush1.msra.mxu0 %v71
    %133 = vmatprep.subr.mxu0 0.0
    %134 = vmatpush1.msra.mxu0 %v70
    %135 = vmatprep.subr.mxu0 0.0
    %136 = vmatpush1.msra.mxu0 %v69
    %137 = vmatprep.subr.mxu0 0.0
    %138 = vmatpush1.msra.mxu0 %v68
    %139 = vmatprep.subr.mxu0 0.0
    %140 = vmatpush2.msra.mxu0 0.0
    %141 = vmatprep.subr.mxu0 0.0
    %142 = vmatpush2.msra.mxu0 0.0
    %143 = vmatprep.subr.mxu0 0.0
    %144 = vmatpush2.msra.mxu0 0.0
    %145 = vmatprep.subr.mxu0 0.0
    %146 = vmatpush2.msra.mxu0 0.0
    %147 = vmatprep.subr.mxu0 0.0
    %148 = vmatpush2.msra.mxu0 0.0
    %149 = vmatprep.subr.mxu0 0.0
    %150 = vmatpush2.msra.mxu0 0.0
    %151 = vmatprep.subr.mxu0 0.0
    %152 = vmatpush2.msra.mxu0 0.0
    %153 = vmatprep.subr.mxu0 0.0
    %154 = vmatpush2.msra.mxu0 0.0
    %155 = vmatprep.subr.mxu0 0.0
    %156 = vmatpush2.msra.mxu0 0.0
    %157 = vmatprep.subr.mxu0 0.0
    %158 = vmatpush2.msra.mxu0 0.0
    %159 = vmatprep.subr.mxu0 0.0
    %160 = vmatpush2.msra.mxu0 0.0
    %161 = vmatprep.subr.mxu0 0.0
    %162 = vmatpush2.msra.mxu0 0.0
    %163 = vmatprep.subr.mxu0 0.0
    %164 = vmatpush2.msra.mxu0 0.0
    %165 = vmatprep.subr.mxu0 0.0
    %166 = vmatpush2.msra.mxu0 0.0
    %167 = vmatprep.subr.mxu0 0.0
    %168 = vmatpush2.msra.mxu0 0.0
    %169 = vmatprep.subr.mxu0 0.0
    %170 = vmatpush2.msra.mxu0 0.0
    %171 = vmatprep.mubr.f32.mxu0 0.0
    %172 = vmatmul.mubr.f32.gmra.mxu0 %v87
    %v173 = vpop.f32.mrf.mxu0
    %v174 = vadd.f32 0.0, %v173
    %v175 = vpop.f32.mrf.mxu0
    %176 = vdwg.mxu0
    %v177 = vadd.f32 %v106, %v174
    %v178 = vtanh.pop %v177
    %179 = vset.pattern.permute.xlu0 1
    %180 = vperm.xlu0 %179, %v86
    %v181 = vpop.permute.xlu0 %180
    %v183 = vmul.f32 %v181, %v97
    %v184 = vadd.f32 %v183, %v104
    %185 = vmatprep.subr.mxu0 0.0
    %186 = vmatpush1.msra.mxu0 %v83
    %187 = vmatprep.subr.mxu0 0.0
    %188 = vmatpush1.msra.mxu0 %v82
    %189 = vmatprep.subr.mxu0 0.0
    %190 = vmatpush1.msra.mxu0 %v81
    %191 = vmatprep.subr.mxu0 0.0
    %192 = vmatpush1.msra.mxu0 %v80
    %193 = vmatprep.subr.mxu0 0.0
    %194 = vmatpush1.msra.mxu0 %v79
    %195 = vmatprep.subr.mxu0 0.0
    %196 = vmatpush1.msra.mxu0 %v78
    %197 = vmatprep.subr.mxu0 0.0
    %198 = vmatpush1.msra.mxu0 %v77
    %199 = vmatprep.subr.mxu0 0.0
    %200 = vmatpush1.msra.mxu0 %v76
    %201 = vmatprep.subr.mxu0 0.0
    %202 = vmatpush1.msra.mxu0 %v75
    %203 = vmatprep.subr.mxu0 0.0
    %204 = vmatpush1.msra.mxu0 %v74
    %205 = vmatprep.subr.mxu0 0.0
    %206 = vmatpush1.msra.mxu0 %v73
    %207 = vmatprep.subr.mxu0 0.0
    %208 = vmatpush1.msra.mxu0 %v72
    %209 = vmatprep.subr.mxu0 0.0
    %210 = vmatpush1.msra.mxu0 %v71
    %211 = vmatprep.subr.mxu0 0.0
    %212 = vmatpush1.msra.mxu0 %v70
    %213 = vmatprep.subr.mxu0 0.0
    %214 = vmatpush1.msra.mxu0 %v69
    %215 = vmatprep.subr.mxu0 0.0
    %216 = vmatpush1.msra.mxu0 %v68
    %217 = vmatprep.subr.mxu0 0.0
    %218 = vmatpush2.msra.mxu0 0.0
    %219 = vmatprep.subr.mxu0 0.0
    %220 = vmatpush2.msra.mxu0 0.0
    %221 = vmatprep.subr.mxu0 0.0
    %222 = vmatpush2.msra.mxu0 0.0
    %223 = vmatprep.subr.mxu0 0.0
    %224 = vmatpush2.msra.mxu0 0.0
    %225 = vmatprep.subr.mxu0 0.0
    %226 = vmatpush2.msra.mxu0 0.0
    %227 = vmatprep.subr.mxu0 0.0
    %228 = vmatpush2.msra.mxu0 0.0
    %229 = vmatprep.subr.mxu0 0.0
    %230 = vmatpush2.msra.mxu0 0.0
    %231 = vmatprep.subr.mxu0 0.0
    %232 = vmatpush2.msra.mxu0 0.0
    %233 = vmatprep.subr.mxu0 0.0
    %234 = vmatpush2.msra.mxu0 0.0
    %235 = vmatprep.subr.mxu0 0.0
    %236 = vmatpush2.msra.mxu0 0.0
    %237 = vmatprep.subr.mxu0 0.0
    %238 = vmatpush2.msra.mxu0 0.0
    %239 = vmatprep.subr.mxu0 0.0
    %240 = vmatpush2.msra.mxu0 0.0
    %241 = vmatprep.subr.mxu0 0.0
    %242 = vmatpush2.msra.mxu0 0.0
    %243 = vmatprep.subr.mxu0 0.0
    %244 = vmatpush2.msra.mxu0 0.0
    %245 = vmatprep.subr.mxu0 0.0
    %246 = vmatpush2.msra.mxu0 0.0
    %247 = vmatprep.subr.mxu0 0.0
    %248 = vmatpush2.msra.mxu0 0.0
    %249 = vmatprep.mubr.f32.mxu0 0.0
    %250 = vmatmul.mubr.f32.gmra.mxu0 %v178
    %v251 = vpop.f32.mrf.mxu0
    %v252 = vadd.f32 0.0, %v251
    %v253 = vpop.f32.mrf.mxu0
    %254 = vdwg.mxu0
    %v255 = vadd.f32 %v184, %v252
    %v256 = vtanh.pop %v255
    %257 = vset.pattern.permute.xlu0 2
    %258 = vperm.xlu0 %257, %v86
    %v259 = vpop.permute.xlu0 %258
    %v261 = vmul.f32 %v259, %v97
    %v262 = vadd.f32 %v261, %v104
    %263 = vmatprep.subr.mxu0 0.0
    %264 = vmatpush1.msra.mxu0 %v83
    %265 = vmatprep.subr.mxu0 0.0
    %266 = vmatpush1.msra.mxu0 %v82
    %267 = vmatprep.subr.mxu0 0.0
    %268 = vmatpush1.msra.mxu0 %v81
    %269 = vmatprep.subr.mxu0 0.0
    %270 = vmatpush1.msra.mxu0 %v80
    %271 = vmatprep.subr.mxu0 0.0
    %272 = vmatpush1.msra.mxu0 %v79
    %273 = vmatprep.subr.mxu0 0.0
    %274 = vmatpush1.msra.mxu0 %v78
    %275 = vmatprep.subr.mxu0 0.0
    %276 = vmatpush1.msra.mxu0 %v77
    %277 = vmatprep.subr.mxu0 0.0
    %278 = vmatpush1.msra.mxu0 %v76
    %279 = vmatprep.subr.mxu0 0.0
    %280 = vmatpush1.msra.mxu0 %v75
    %281 = vmatprep.subr.mxu0 0.0
    %282 = vmatpush1.msra.mxu0 %v74
    %283 = vmatprep.subr.mxu0 0.0
    %284 = vmatpush1.msra.mxu0 %v73
    %285 = vmatprep.subr.mxu0 0.0
    %286 = vmatpush1.msra.mxu0 %v72
    %287 = vmatprep.subr.mxu0 0.0
    %288 = vmatpush1.msra.mxu0 %v71
    %289 = vmatprep.subr.mxu0 0.0
    %290 = vmatpush1.msra.mxu0 %v70
    %291 = vmatprep.subr.mxu0 0.0
    %292 = vmatpush1.msra.mxu0 %v69
    %293 = vmatprep.subr.mxu0 0.0
    %294 = vmatpush1.msra.mxu0 %v68
    %295 = vmatprep.subr.mxu0 0.0
    %296 = vmatpush2.msra.mxu0 0.0
    %297 = vmatprep.subr.mxu0 0.0
    %298 = vmatpush2.msra.mxu0 0.0
    %299 = vmatprep.subr.mxu0 0.0
    %300 = vmatpush2.msra.mxu0 0.0
    %301 = vmatprep.subr.mxu0 0.0
    %302 = vmatpush2.msra.mxu0 0.0
    %303 = vmatprep.subr.mxu0 0.0
    %304 = vmatpush2.msra.mxu0 0.0
    %305 = vmatprep.subr.mxu0 0.0
    %306 = vmatpush2.msra.mxu0 0.0
    %307 = vmatprep.subr.mxu0 0.0
    %308 = vmatpush2.msra.mxu0 0.0
    %309 = vmatprep.subr.mxu0 0.0
    %310 = vmatpush2.msra.mxu0 0.0
    %311 = vmatprep.subr.mxu0 0.0
    %312 = vmatpush2.msra.mxu0 0.0
    %313 = vmatprep.subr.mxu0 0.0
    %314 = vmatpush2.msra.mxu0 0.0
    %315 = vmatprep.subr.mxu0 0.0
    %316 = vmatpush2.msra.mxu0 0.0
    %317 = vmatprep.subr.mxu0 0.0
    %318 = vmatpush2.msra.mxu0 0.0
    %319 = vmatprep.subr.mxu0 0.0
    %320 = vmatpush2.msra.mxu0 0.0
    %321 = vmatprep.subr.mxu0 0.0
    %322 = vmatpush2.msra.mxu0 0.0
    %323 = vmatprep.subr.mxu0 0.0
    %324 = vmatpush2.msra.mxu0 0.0
    %325 = vmatprep.subr.mxu0 0.0
    %326 = vmatpush2.msra.mxu0 0.0
    %327 = vmatprep.mubr.f32.mxu0 0.0
    %328 = vmatmul.mubr.f32.gmra.mxu0 %v256
    %v329 = vpop.f32.mrf.mxu0
    %v330 = vadd.f32 0.0, %v329
    %v331 = vpop.f32.mrf.mxu0
    %332 = vdwg.mxu0
    %v333 = vadd.f32 %v262, %v330
    %v334 = vtanh.pop %v333
    %335 = vset.pattern.permute.xlu0 3
    %336 = vperm.xlu0 %335, %v86
    %v337 = vpop.permute.xlu0 %336
    %v339 = vmul.f32 %v337, %v97
    %v340 = vadd.f32 %v339, %v104
    %341 = vmatprep.subr.mxu0 0.0
    %342 = vmatpush1.msra.mxu0 %v83
    %343 = vmatprep.subr.mxu0 0.0
    %344 = vmatpush1.msra.mxu0 %v82
    %345 = vmatprep.subr.mxu0 0.0
    %346 = vmatpush1.msra.mxu0 %v81
    %347 = vmatprep.subr.mxu0 0.0
    %348 = vmatpush1.msra.mxu0 %v80
    %349 = vmatprep.subr.mxu0 0.0
    %350 = vmatpush1.msra.mxu0 %v79
    %351 = vmatprep.subr.mxu0 0.0
    %352 = vmatpush1.msra.mxu0 %v78
    %353 = vmatprep.subr.mxu0 0.0
    %354 = vmatpush1.msra.mxu0 %v77
    %355 = vmatprep.subr.mxu0 0.0
    %356 = vmatpush1.msra.mxu0 %v76
    %357 = vmatprep.subr.mxu0 0.0
    %358 = vmatpush1.msra.mxu0 %v75
    %359 = vmatprep.subr.mxu0 0.0
    %360 = vmatpush1.msra.mxu0 %v74
    %361 = vmatprep.subr.mxu0 0.0
    %362 = vmatpush1.msra.mxu0 %v73
    %363 = vmatprep.subr.mxu0 0.0
    %364 = vmatpush1.msra.mxu0 %v72
    %365 = vmatprep.subr.mxu0 0.0
    %366 = vmatpush1.msra.mxu0 %v71
    %367 = vmatprep.subr.mxu0 0.0
    %368 = vmatpush1.msra.mxu0 %v70
    %369 = vmatprep.subr.mxu0 0.0
    %370 = vmatpush1.msra.mxu0 %v69
    %371 = vmatprep.subr.mxu0 0.0
    %372 = vmatpush1.msra.mxu0 %v68
    %373 = vmatprep.subr.mxu0 0.0
    %374 = vmatpush2.msra.mxu0 0.0
    %375 = vmatprep.subr.mxu0 0.0
    %376 = vmatpush2.msra.mxu0 0.0
    %377 = vmatprep.subr.mxu0 0.0
    %378 = vmatpush2.msra.mxu0 0.0
    %379 = vmatprep.subr.mxu0 0.0
    %380 = vmatpush2.msra.mxu0 0.0
    %381 = vmatprep.subr.mxu0 0.0
    %382 = vmatpush2.msra.mxu0 0.0
    %383 = vmatprep.subr.mxu0 0.0
    %384 = vmatpush2.msra.mxu0 0.0
    %385 = vmatprep.subr.mxu0 0.0
    %386 = vmatpush2.msra.mxu0 0.0
    %387 = vmatprep.subr.mxu0 0.0
    %388 = vmatpush2.msra.mxu0 0.0
    %389 = vmatprep.subr.mxu0 0.0
    %390 = vmatpush2.msra.mxu0 0.0
    %391 = vmatprep.subr.mxu0 0.0
    %392 = vmatpush2.msra.mxu0 0.0
    %393 = vmatprep.subr.mxu0 0.0
    %394 = vmatpush2.msra.mxu0 0.0
    %395 = vmatprep.subr.mxu0 0.0
    %396 = vmatpush2.msra.mxu0 0.0
    %397 = vmatprep.subr.mxu0 0.0
    %398 = vmatpush2.msra.mxu0 0.0
    %399 = vmatprep.subr.mxu0 0.0
    %400 = vmatpush2.msra.mxu0 0.0
    %401 = vmatprep.subr.mxu0 0.0
    %402 = vmatpush2.msra.mxu0 0.0
    %403 = vmatprep.subr.mxu0 0.0
    %404 = vmatpush2.msra.mxu0 0.0
    %405 = vmatprep.mubr.f32.mxu0 0.0
    %406 = vmatmul.mubr.f32.gmra.mxu0 %v334
    %v407 = vpop.f32.mrf.mxu0
    %v408 = vadd.f32 0.0, %v407
    %v409 = vpop.f32.mrf.mxu0
    %410 = vdwg.mxu0
    %v411 = vadd.f32 %v340, %v408
    %v412 = vtanh.pop %v411
    %413 = vset.pattern.permute.xlu0 4
    %414 = vperm.xlu0 %413, %v86
    %v415 = vpop.permute.xlu0 %414
    %v417 = vmul.f32 %v415, %v97
    %v418 = vadd.f32 %v417, %v104
    %419 = vmatprep.subr.mxu0 0.0
    %420 = vmatpush1.msra.mxu0 %v83
    %421 = vmatprep.subr.mxu0 0.0
    %422 = vmatpush1.msra.mxu0 %v82
    %423 = vmatprep.subr.mxu0 0.0
    %424 = vmatpush1.msra.mxu0 %v81
    %425 = vmatprep.subr.mxu0 0.0
    %426 = vmatpush1.msra.mxu0 %v80
    %427 = vmatprep.subr.mxu0 0.0
    %428 = vmatpush1.msra.mxu0 %v79
    %429 = vmatprep.subr.mxu0 0.0
    %430 = vmatpush1.msra.mxu0 %v78
    %431 = vmatprep.subr.mxu0 0.0
    %432 = vmatpush1.msra.mxu0 %v77
    %433 = vmatprep.subr.mxu0 0.0
    %434 = vmatpush1.msra.mxu0 %v76
    %435 = vmatprep.subr.mxu0 0.0
    %436 = vmatpush1.msra.mxu0 %v75
    %437 = vmatprep.subr.mxu0 0.0
    %438 = vmatpush1.msra.mxu0 %v74
    %439 = vmatprep.subr.mxu0 0.0
    %440 = vmatpush1.msra.mxu0 %v73
    %441 = vmatprep.subr.mxu0 0.0
    %442 = vmatpush1.msra.mxu0 %v72
    %443 = vmatprep.subr.mxu0 0.0
    %444 = vmatpush1.msra.mxu0 %v71
    %445 = vmatprep.subr.mxu0 0.0
    %446 = vmatpush1.msra.mxu0 %v70
    %447 = vmatprep.subr.mxu0 0.0
    %448 = vmatpush1.msra.mxu0 %v69
    %449 = vmatprep.subr.mxu0 0.0
    %450 = vmatpush1.msra.mxu0 %v68
    %451 = vmatprep.subr.mxu0 0.0
    %452 = vmatpush2.msra.mxu0 0.0
    %453 = vmatprep.subr.mxu0 0.0
    %454 = vmatpush2.msra.mxu0 0.0
    %455 = vmatprep.subr.mxu0 0.0
    %456 = vmatpush2.msra.mxu0 0.0
    %457 = vmatprep.subr.mxu0 0.0
    %458 = vmatpush2.msra.mxu0 0.0
    %459 = vmatprep.subr.mxu0 0.0
    %460 = vmatpush2.msra.mxu0 0.0
    %461 = vmatprep.subr.mxu0 0.0
    %462 = vmatpush2.msra.mxu0 0.0
    %463 = vmatprep.subr.mxu0 0.0
    %464 = vmatpush2.msra.mxu0 0.0
    %465 = vmatprep.subr.mxu0 0.0
    %466 = vmatpush2.msra.mxu0 0.0
    %467 = vmatprep.subr.mxu0 0.0
    %468 = vmatpush2.msra.mxu0 0.0
    %469 = vmatprep.subr.mxu0 0.0
    %470 = vmatpush2.msra.mxu0 0.0
    %471 = vmatprep.subr.mxu0 0.0
    %472 = vmatpush2.msra.mxu0 0.0
    %473 = vmatprep.subr.mxu0 0.0
    %474 = vmatpush2.msra.mxu0 0.0
    %475 = vmatprep.subr.mxu0 0.0
    %476 = vmatpush2.msra.mxu0 0.0
    %477 = vmatprep.subr.mxu0 0.0
    %478 = vmatpush2.msra.mxu0 0.0
    %479 = vmatprep.subr.mxu0 0.0
    %480 = vmatpush2.msra.mxu0 0.0
    %481 = vmatprep.subr.mxu0 0.0
    %482 = vmatpush2.msra.mxu0 0.0
    %483 = vmatprep.mubr.f32.mxu0 0.0
    %484 = vmatmul.mubr.f32.gmra.mxu0 %v412
    %v485 = vpop.f32.mrf.mxu0
    %v486 = vadd.f32 0.0, %v485
    %v487 = vpop.f32.mrf.mxu0
    %488 = vdwg.mxu0
    %v489 = vadd.f32 %v418, %v486
    %v490 = vtanh.pop %v489
    %491 = vset.pattern.permute.xlu0 5
    %492 = vperm.xlu0 %491, %v86
    %v493 = vpop.permute.xlu0 %492
    %v495 = vmul.f32 %v493, %v97
    %v496 = vadd.f32 %v495, %v104
    %497 = vmatprep.subr.mxu0 0.0
    %498 = vmatpush1.msra.mxu0 %v83
    %499 = vmatprep.subr.mxu0 0.0
    %500 = vmatpush1.msra.mxu0 %v82
    %501 = vmatprep.subr.mxu0 0.0
    %502 = vmatpush1.msra.mxu0 %v81
    %503 = vmatprep.subr.mxu0 0.0
    %504 = vmatpush1.msra.mxu0 %v80
    %505 = vmatprep.subr.mxu0 0.0
    %506 = vmatpush1.msra.mxu0 %v79
    %507 = vmatprep.subr.mxu0 0.0
    %508 = vmatpush1.msra.mxu0 %v78
    %509 = vmatprep.subr.mxu0 0.0
    %510 = vmatpush1.msra.mxu0 %v77
    %511 = vmatprep.subr.mxu0 0.0
    %512 = vmatpush1.msra.mxu0 %v76
    %513 = vmatprep.subr.mxu0 0.0
    %514 = vmatpush1.msra.mxu0 %v75
    %515 = vmatprep.subr.mxu0 0.0
    %516 = vmatpush1.msra.mxu0 %v74
    %517 = vmatprep.subr.mxu0 0.0
    %518 = vmatpush1.msra.mxu0 %v73
    %519 = vmatprep.subr.mxu0 0.0
    %520 = vmatpush1.msra.mxu0 %v72
    %521 = vmatprep.subr.mxu0 0.0
    %522 = vmatpush1.msra.mxu0 %v71
    %523 = vmatprep.subr.mxu0 0.0
    %524 = vmatpush1.msra.mxu0 %v70
    %525 = vmatprep.subr.mxu0 0.0
    %526 = vmatpush1.msra.mxu0 %v69
    %527 = vmatprep.subr.mxu0 0.0
    %528 = vmatpush1.msra.mxu0 %v68
    %529 = vmatprep.subr.mxu0 0.0
    %530 = vmatpush2.msra.mxu0 0.0
    %531 = vmatprep.subr.mxu0 0.0
    %532 = vmatpush2.msra.mxu0 0.0
    %533 = vmatprep.subr.mxu0 0.0
    %534 = vmatpush2.msra.mxu0 0.0
    %535 = vmatprep.subr.mxu0 0.0
    %536 = vmatpush2.msra.mxu0 0.0
    %537 = vmatprep.subr.mxu0 0.0
    %538 = vmatpush2.msra.mxu0 0.0
    %539 = vmatprep.subr.mxu0 0.0
    %540 = vmatpush2.msra.mxu0 0.0
    %541 = vmatprep.subr.mxu0 0.0
    %542 = vmatpush2.msra.mxu0 0.0
    %543 = vmatprep.subr.mxu0 0.0
    %544 = vmatpush2.msra.mxu0 0.0
    %545 = vmatprep.subr.mxu0 0.0
    %546 = vmatpush2.msra.mxu0 0.0
    %547 = vmatprep.subr.mxu0 0.0
    %548 = vmatpush2.msra.mxu0 0.0
    %549 = vmatprep.subr.mxu0 0.0
    %550 = vmatpush2.msra.mxu0 0.0
    %551 = vmatprep.subr.mxu0 0.0
    %552 = vmatpush2.msra.mxu0 0.0
    %553 = vmatprep.subr.mxu0 0.0
    %554 = vmatpush2.msra.mxu0 0.0
    %555 = vmatprep.subr.mxu0 0.0
    %556 = vmatpush2.msra.mxu0 0.0
    %557 = vmatprep.subr.mxu0 0.0
    %558 = vmatpush2.msra.mxu0 0.0
    %559 = vmatprep.subr.mxu0 0.0
    %560 = vmatpush2.msra.mxu0 0.0
    %561 = vmatprep.mubr.f32.mxu0 0.0
    %562 = vmatmul.mubr.f32.gmra.mxu0 %v490
    %v563 = vpop.f32.mrf.mxu0
    %v564 = vadd.f32 0.0, %v563
    %v565 = vpop.f32.mrf.mxu0
    %566 = vdwg.mxu0
    %v567 = vadd.f32 %v496, %v564
    %v568 = vtanh.pop %v567
    %569 = vset.pattern.permute.xlu0 6
    %570 = vperm.xlu0 %569, %v86
    %v571 = vpop.permute.xlu0 %570
    %v573 = vmul.f32 %v571, %v97
    %v574 = vadd.f32 %v573, %v104
    %575 = vmatprep.subr.mxu0 0.0
    %576 = vmatpush1.msra.mxu0 %v83
    %577 = vmatprep.subr.mxu0 0.0
    %578 = vmatpush1.msra.mxu0 %v82
    %579 = vmatprep.subr.mxu0 0.0
    %580 = vmatpush1.msra.mxu0 %v81
    %581 = vmatprep.subr.mxu0 0.0
    %582 = vmatpush1.msra.mxu0 %v80
    %583 = vmatprep.subr.mxu0 0.0
    %584 = vmatpush1.msra.mxu0 %v79
    %585 = vmatprep.subr.mxu0 0.0
    %586 = vmatpush1.msra.mxu0 %v78
    %587 = vmatprep.subr.mxu0 0.0
    %588 = vmatpush1.msra.mxu0 %v77
    %589 = vmatprep.subr.mxu0 0.0
    %590 = vmatpush1.msra.mxu0 %v76
    %591 = vmatprep.subr.mxu0 0.0
    %592 = vmatpush1.msra.mxu0 %v75
    %593 = vmatprep.subr.mxu0 0.0
    %594 = vmatpush1.msra.mxu0 %v74
    %595 = vmatprep.subr.mxu0 0.0
    %596 = vmatpush1.msra.mxu0 %v73
    %597 = vmatprep.subr.mxu0 0.0
    %598 = vmatpush1.msra.mxu0 %v72
    %599 = vmatprep.subr.mxu0 0.0
    %600 = vmatpush1.msra.mxu0 %v71
    %601 = vmatprep.subr.mxu0 0.0
    %602 = vmatpush1.msra.mxu0 %v70
    %603 = vmatprep.subr.mxu0 0.0
    %604 = vmatpush1.msra.mxu0 %v69
    %605 = vmatprep.subr.mxu0 0.0
    %606 = vmatpush1.msra.mxu0 %v68
    %607 = vmatprep.subr.mxu0 0.0
    %608 = vmatpush2.msra.mxu0 0.0
    %609 = vmatprep.subr.mxu0 0.0
    %610 = vmatpush2.msra.mxu0 0.0
    %611 = vmatprep.subr.mxu0 0.0
    %612 = vmatpush2.msra.mxu0 0.0
    %613 = vmatprep.subr.mxu0 0.0
    %614 = vmatpush2.msra.mxu0 0.0
    %615 = vmatprep.subr.mxu0 0.0
    %616 = vmatpush2.msra.mxu0 0.0
    %617 = vmatprep.subr.mxu0 0.0
    %618 = vmatpush2.msra.mxu0 0.0
    %619 = vmatprep.subr.mxu0 0.0
    %620 = vmatpush2.msra.mxu0 0.0
    %621 = vmatprep.subr.mxu0 0.0
    %622 = vmatpush2.msra.mxu0 0.0
    %623 = vmatprep.subr.mxu0 0.0
    %624 = vmatpush2.msra.mxu0 0.0
    %625 = vmatprep.subr.mxu0 0.0
    %626 = vmatpush2.msra.mxu0 0.0
    %627 = vmatprep.subr.mxu0 0.0
    %628 = vmatpush2.msra.mxu0 0.0
    %629 = vmatprep.subr.mxu0 0.0
    %630 = vmatpush2.msra.mxu0 0.0
    %631 = vmatprep.subr.mxu0 0.0
    %632 = vmatpush2.msra.mxu0 0.0
    %633 = vmatprep.subr.mxu0 0.0
    %634 = vmatpush2.msra.mxu0 0.0
    %635 = vmatprep.subr.mxu0 0.0
    %636 = vmatpush2.msra.mxu0 0.0
    %637 = vmatprep.subr.mxu0 0.0
    %638 = vmatpush2.msra.mxu0 0.0
    %639 = vmatprep.mubr.f32.mxu0 0.0
    %640 = vmatmul.mubr.f32.gmra.mxu0 %v568
    %v641 = vpop.f32.mrf.mxu0
    %v642 = vadd.f32 0.0, %v641
    %v643 = vpop.f32.mrf.mxu0
    %644 = vdwg.mxu0
    %v645 = vadd.f32 %v574, %v642
    %v646 = vtanh.pop %v645
    %647 = vset.pattern.permute.xlu0 7
    %648 = vperm.xlu0 %647, %v86
    %v649 = vpop.permute.xlu0 %648
    %v651 = vmul.f32 %v649, %v97
    %v652 = vadd.f32 %v651, %v104
    %653 = vmatprep.subr.mxu0 0.0
    %654 = vmatpush1.msra.mxu0 %v83
    %655 = vmatprep.subr.mxu0 0.0
    %656 = vmatpush1.msra.mxu0 %v82
    %657 = vmatprep.subr.mxu0 0.0
    %658 = vmatpush1.msra.mxu0 %v81
    %659 = vmatprep.subr.mxu0 0.0
    %660 = vmatpush1.msra.mxu0 %v80
    %661 = vmatprep.subr.mxu0 0.0
    %662 = vmatpush1.msra.mxu0 %v79
    %663 = vmatprep.subr.mxu0 0.0
    %664 = vmatpush1.msra.mxu0 %v78
    %665 = vmatprep.subr.mxu0 0.0
    %666 = vmatpush1.msra.mxu0 %v77
    %667 = vmatprep.subr.mxu0 0.0
    %668 = vmatpush1.msra.mxu0 %v76
    %669 = vmatprep.subr.mxu0 0.0
    %670 = vmatpush1.msra.mxu0 %v75
    %671 = vmatprep.subr.mxu0 0.0
    %672 = vmatpush1.msra.mxu0 %v74
    %673 = vmatprep.subr.mxu0 0.0
    %674 = vmatpush1.msra.mxu0 %v73
    %675 = vmatprep.subr.mxu0 0.0
    %676 = vmatpush1.msra.mxu0 %v72
    %677 = vmatprep.subr.mxu0 0.0
    %678 = vmatpush1.msra.mxu0 %v71
    %679 = vmatprep.subr.mxu0 0.0
    %680 = vmatpush1.msra.mxu0 %v70
    %681 = vmatprep.subr.mxu0 0.0
    %682 = vmatpush1.msra.mxu0 %v69
    %683 = vmatprep.subr.mxu0 0.0
    %684 = vmatpush1.msra.mxu0 %v68
    %685 = vmatprep.subr.mxu0 0.0
    %686 = vmatpush2.msra.mxu0 0.0
    %687 = vmatprep.subr.mxu0 0.0
    %688 = vmatpush2.msra.mxu0 0.0
    %689 = vmatprep.subr.mxu0 0.0
    %690 = vmatpush2.msra.mxu0 0.0
    %691 = vmatprep.subr.mxu0 0.0
    %692 = vmatpush2.msra.mxu0 0.0
    %693 = vmatprep.subr.mxu0 0.0
    %694 = vmatpush2.msra.mxu0 0.0
    %695 = vmatprep.subr.mxu0 0.0
    %696 = vmatpush2.msra.mxu0 0.0
    %697 = vmatprep.subr.mxu0 0.0
    %698 = vmatpush2.msra.mxu0 0.0
    %699 = vmatprep.subr.mxu0 0.0
    %700 = vmatpush2.msra.mxu0 0.0
    %701 = vmatprep.subr.mxu0 0.0
    %702 = vmatpush2.msra.mxu0 0.0
    %703 = vmatprep.subr.mxu0 0.0
    %704 = vmatpush2.msra.mxu0 0.0
    %705 = vmatprep.subr.mxu0 0.0
    %706 = vmatpush2.msra.mxu0 0.0
    %707 = vmatprep.subr.mxu0 0.0
    %708 = vmatpush2.msra.mxu0 0.0
    %709 = vmatprep.subr.mxu0 0.0
    %710 = vmatpush2.msra.mxu0 0.0
    %711 = vmatprep.subr.mxu0 0.0
    %712 = vmatpush2.msra.mxu0 0.0
    %713 = vmatprep.subr.mxu0 0.0
    %714 = vmatpush2.msra.mxu0 0.0
    %715 = vmatprep.subr.mxu0 0.0
    %716 = vmatpush2.msra.mxu0 0.0
    %717 = vmatprep.mubr.f32.mxu0 0.0
    %718 = vmatmul.mubr.f32.gmra.mxu0 %v646
    %v719 = vpop.f32.mrf.mxu0
    %v720 = vadd.f32 0.0, %v719
    %v721 = vpop.f32.mrf.mxu0
    %722 = vdwg.mxu0
    %v723 = vadd.f32 %v652, %v720
    %v724 = vtanh.pop %v723
    %725 = vst [vmem:[#allocation2] sm:$0xff] %v724
    // Predicated region
    $region42: #{tpu_custom_call.1} parent=1 // pred_check
      %p726 = pneg %p63
    $region43: #{tpu_custom_call.1} parent=1 // pred_check_branch
      %728 = sbr.rel (%p726) target = $region45
    $region44: #{tpu_custom_call.1} parent=1 // pred_region
      %v729 = vld [vmem:[#allocation8] sm:$0xff]
      %v730 = vld [vmem:[#allocation8 + $0x8] sm:$0xff]
      %v731 = vld [vmem:[#allocation8 + $0x10] sm:$0xff]
      %v732 = vld [vmem:[#allocation8 + $0x18] sm:$0xff]
      %v733 = vld [vmem:[#allocation8 + $0x20] sm:$0xff]
      %v734 = vld [vmem:[#allocation8 + $0x28] sm:$0xff]
      %v735 = vld [vmem:[#allocation8 + $0x30] sm:$0xff]
      %v736 = vld [vmem:[#allocation8 + $0x38] sm:$0xff]
      %v737 = vld [vmem:[#allocation8 + $0x40] sm:$0xff]
      %v738 = vld [vmem:[#allocation8 + $0x48] sm:$0xff]
      %v739 = vld [vmem:[#allocation8 + $0x50] sm:$0xff]
      %v740 = vld [vmem:[#allocation8 + $0x58] sm:$0xff]
      %v741 = vld [vmem:[#allocation8 + $0x60] sm:$0xff]
      %v742 = vld [vmem:[#allocation8 + $0x68] sm:$0xff]
      %v743 = vld [vmem:[#allocation8 + $0x70] sm:$0xff]
      %v744 = vld [vmem:[#allocation8 + $0x78] sm:$0xff]
      %v745 = vld [vmem:[%s5] sm:$0x1]
      %v747 = vlaneseq
      %v748 = vshrl.u32 %v747, 7
      %v749 = vsub.s32 0, %v748
      %v750 = vrot.slane %v745, %v749
      %752 = vmatprep.subr.mxu0 0.0
      %753 = vmatpush1.msra.mxu0 %v744
      %754 = vmatprep.subr.mxu0 0.0
      %755 = vmatpush1.msra.mxu0 %v743
      %756 = vmatprep.subr.mxu0 0.0
      %757 = vmatpush1.msra.mxu0 %v742
      %758 = vmatprep.subr.mxu0 0.0
      %759 = vmatpush1.msra.mxu0 %v741
      %760 = vmatprep.subr.mxu0 0.0
      %761 = vmatpush1.msra.mxu0 %v740
      %762 = vmatprep.subr.mxu0 0.0
      %763 = vmatpush1.msra.mxu0 %v739
      %764 = vmatprep.subr.mxu0 0.0
      %765 = vmatpush1.msra.mxu0 %v738
      %766 = vmatprep.subr.mxu0 0.0
      %767 = vmatpush1.msra.mxu0 %v737
      %768 = vmatprep.subr.mxu0 0.0
      %769 = vmatpush1.msra.mxu0 %v736
      %770 = vmatprep.subr.mxu0 0.0
      %771 = vmatpush1.msra.mxu0 %v735
      %772 = vmatprep.subr.mxu0 0.0
      %773 = vmatpush1.msra.mxu0 %v734
      %774 = vmatprep.subr.mxu0 0.0
      %775 = vmatpush1.msra.mxu0 %v733
      %776 = vmatprep.subr.mxu0 0.0
      %777 = vmatpush1.msra.mxu0 %v732
      %778 = vmatprep.subr.mxu0 0.0
      %779 = vmatpush1.msra.mxu0 %v731
      %780 = vmatprep.subr.mxu0 0.0
      %781 = vmatpush1.msra.mxu0 %v730
      %782 = vmatprep.subr.mxu0 0.0
      %783 = vmatpush1.msra.mxu0 %v729
      %784 = vmatprep.subr.mxu0 0.0
      %785 = vmatpush2.msra.mxu0 0.0
      %786 = vmatprep.subr.mxu0 0.0
      %787 = vmatpush2.msra.mxu0 0.0
      %788 = vmatprep.subr.mxu0 0.0
      %789 = vmatpush2.msra.mxu0 0.0
      %790 = vmatprep.subr.mxu0 0.0
      %791 = vmatpush2.msra.mxu0 0.0
      %792 = vmatprep.subr.mxu0 0.0
      %793 = vmatpush2.msra.mxu0 0.0
      %794 = vmatprep.subr.mxu0 0.0
      %795 = vmatpush2.msra.mxu0 0.0
      %796 = vmatprep.subr.mxu0 0.0
      %797 = vmatpush2.msra.mxu0 0.0
      %798 = vmatprep.subr.mxu0 0.0
      %799 = vmatpush2.msra.mxu0 0.0
      %800 = vmatprep.subr.mxu0 0.0
      %801 = vmatpush2.msra.mxu0 0.0
      %802 = vmatprep.subr.mxu0 0.0
      %803 = vmatpush2.msra.mxu0 0.0
      %804 = vmatprep.subr.mxu0 0.0
      %805 = vmatpush2.msra.mxu0 0.0
      %806 = vmatprep.subr.mxu0 0.0
      %807 = vmatpush2.msra.mxu0 0.0
      %808 = vmatprep.subr.mxu0 0.0
      %809 = vmatpush2.msra.mxu0 0.0
      %810 = vmatprep.subr.mxu0 0.0
      %811 = vmatpush2.msra.mxu0 0.0
      %812 = vmatprep.subr.mxu0 0.0
      %813 = vmatpush2.msra.mxu0 0.0
      %814 = vmatprep.subr.mxu0 0.0
      %815 = vmatpush2.msra.mxu0 0.0
      %816 = vmatprep.mubr.f32.mxu0 0.0
      %817 = vmatmul.mubr.f32.gmra.mxu0 %v724
      %v818 = vpop.f32.mrf.mxu0
      %v819 = vadd.f32 %v750, %v818
      %v820 = vpop.f32.mrf.mxu0
      %821 = vdwg.mxu0
      %822 = vst [vmem:[#allocation9] sm:$0xff] %v819
    $region45: #{tpu_custom_call.1} parent=1 // pred_fallthru
      _
    // Predicated region
    $region46: #{tpu_custom_call.1} parent=1 // pred_check
      _
    $region47: #{tpu_custom_call.1} parent=1 // pred_check_branch
      %824 = sbr.rel (0) target = $region49
    $region48: #{tpu_custom_call.1} parent=1 // pred_region
      %s826 = ssub.s32 128, 128
      %827 = vsyncadd [#allocation5], %s826
      %s829 = sshll.u32 [#allocation9], 4
      %s830 = int_to_ptr.vmem [resolvable:$true] %s829
      %832 = dma.vmem_to_hbm [thread:$0]  %s830, 128, %s6, [#allocation5]
    $region49: #{tpu_custom_call.1} parent=1 // pred_fallthru
      _
    // Predicated region
    $region50: #{tpu_custom_call.1} parent=1 // pred_check
      _
    $region51: #{tpu_custom_call.1} parent=1 // pred_check_branch
      %834 = sbr.rel (0) target = $region53
    $region52: #{tpu_custom_call.1} parent=1 // pred_region
      %835 = dma.done [#allocation5], 128
    $region53: #{tpu_custom_call.1} parent=1 // pred_fallthru
      _
    %836 = vsyncpa [#allocation4], 1
    %837 = vsyncpa [#allocation7], 1
    %838 = vsyncpa [#allocation5], 1

</llo_original>
